<compile_context>
chip_gen: v7x
topology: tpu7x:2x2x1
jax: 0.10.0
libtpu: 0.0.40
codegen_flags: <defaults>
</compile_context>

<pallas_src>
import functools

import jax
import jax.numpy as jnp
from jax.experimental import pallas as pl
from jax.experimental.pallas import tpu as pltpu

IGNORE_INDEX = -100  # PyTorch nn.CrossEntropyLoss default


# ---------------------------------------------------------------------------
# Kernels
# ---------------------------------------------------------------------------
def _cross_entropy_kernel(logits_ref, target_ref, nll_ref, *, ignore_index):
    """Single-pass kernel: whole class axis resident per row tile."""
    # logits_ref: (T, C) native dtype in VMEM;  target_ref: (T, 1) int32
    logits = logits_ref[...].astype(jnp.float32)                     # (T, C)
    _, c = logits.shape
    tgt = target_ref[...]                                            # (T, 1)

    # Numerically-stable log-sum-exp over the class axis.
    m = jnp.max(logits, axis=-1, keepdims=True)                      # (T, 1)
    lse = m + jnp.log(jnp.sum(jnp.exp(logits - m), axis=-1, keepdims=True))

    # Fused target gather: (1, C) iota broadcast against (T, 1) targets — no
    # (T, C) iota / one-hot / log_probs temporaries.
    col = jax.lax.broadcasted_iota(jnp.int32, (1, c), 1)             # (1, C)
    tgt_logit = jnp.sum(jnp.where(col == tgt, logits, 0.0),
                        axis=-1, keepdims=True)                      # (T, 1)

    nll = lse - tgt_logit                                            # (T, 1)
    nll_ref[...] = jnp.where(tgt != ignore_index, nll, 0.0)


def _cross_entropy_ctiled_kernel(logits_ref, target_ref, nll_ref,
                                 m_sc, l_sc, tl_sc,
                                 *, ignore_index, c_total, tile_c):
    """Class-tiled kernel: online LSE over the C axis (large vocabularies)."""
    k = pl.program_id(1)
    nk = pl.num_programs(1)

    @pl.when(k == 0)
    def _():
        m_sc[...] = jnp.full_like(m_sc, -jnp.inf)
        l_sc[...] = jnp.zeros_like(l_sc)
        tl_sc[...] = jnp.zeros_like(tl_sc)

    chunk = logits_ref[...].astype(jnp.float32)                      # (T, tc)
    _, tc = chunk.shape
    tgt = target_ref[...]                                            # (T, 1)

    col = k * tc + jax.lax.broadcasted_iota(jnp.int32, (1, tc), 1)   # (1, tc)
    if c_total % tile_c != 0:
        # Mask the ragged last C block so garbage columns never win the max /
        # contribute to the exp-sum.
        chunk = jnp.where(col < c_total, chunk, -jnp.inf)

    # Target-logit capture (valid targets always hit an unmasked column).
    tl_sc[...] += jnp.sum(jnp.where(col == tgt, chunk, 0.0),
                          axis=-1, keepdims=True)

    # Online log-sum-exp update.
    m_prev = m_sc[...]
    m_new = jnp.maximum(m_prev, jnp.max(chunk, axis=-1, keepdims=True))
    l_sc[...] = (l_sc[...] * jnp.exp(m_prev - m_new)
                 + jnp.sum(jnp.exp(chunk - m_new), axis=-1, keepdims=True))
    m_sc[...] = m_new

    @pl.when(k == nk - 1)
    def _():
        lse = m_sc[...] + jnp.log(l_sc[...])
        nll = lse - tl_sc[...]
        nll_ref[...] = jnp.where(tgt != ignore_index, nll, 0.0)


# ---------------------------------------------------------------------------
# Tile selection (generation-aware)
# ---------------------------------------------------------------------------
def _vmem_capacity_bytes():
    try:
        info = pltpu.get_tpu_info()
        return int(getattr(info, "vmem_capacity_bytes", 64 << 20))
    except Exception:
        return 64 << 20  # conservative fallback (v7x-sized)


def _pick_tiles(n, c, itemsize, block_n=None, block_c=None):
    """Returns (tile_n, tile_c, vmem_limit_bytes).

    Footprint per row ~= double-buffered native input (2*C*itemsize) plus the
    in-kernel f32 upcast / exp / mask temporaries (~3*C*4).  The scoped VMEM
    limit is requested explicitly and the footprint targets ~80% of it.
    """
    vmem_cap = _vmem_capacity_bytes()
    # v5e/v6e (128 MiB physical) -> ~96 MiB scoped; v7x (64 MiB) -> ~48 MiB.
    vmem_limit = min(vmem_cap * 3 // 4, 100 << 20)
    budget = (vmem_limit * 4) // 5

    row_align = {1: 32, 2: 16}.get(itemsize, 8)

    def per_row(tc):
        return 2 * tc * itemsize + 3 * tc * 4

    # --- class tile ---------------------------------------------------------
    if block_c is not None:
        tile_c = min(block_c, c)
    elif row_align * per_row(c) > budget:
        # Even a minimal row tile does not fit -> tile the class axis too
        # (large vocabularies; required on v7x's 64 MiB VMEM).
        tile_c = (budget // (row_align * (2 * itemsize + 12))) // 128 * 128
        tile_c = min(max(tile_c, 128), c)
    else:
        tile_c = c

    # --- row tile ------------------------------------------------------------
    if block_n is not None:
        tile_n = block_n
    else:
        tile_n = budget // max(per_row(tile_c), 1)
        tile_n = max(row_align, min(8192, (tile_n // row_align) * row_align))
        if tile_n >= n:
            tile_n = n  # single block, equal-to-full-dim (always layout-legal)
    return tile_n, tile_c, int(vmem_limit)


# ---------------------------------------------------------------------------
# Wrapper
# ---------------------------------------------------------------------------
def cross_entropy(output, target, ignore_index=IGNORE_INDEX, *,
                  block_n=None, block_c=None):
    """output: (N, C) logits (f32 or bf16 — feed bf16 on v5e: it is DMA-bound);
    target: (N,) int class indices.  Returns scalar f32 mean NLL over rows with
    target != ignore_index (== nn.CrossEntropyLoss with default reduction)."""
    n, c = output.shape
    itemsize = jnp.dtype(output.dtype).itemsize
    tile_n, tile_c, vmem_limit = _pick_tiles(n, c, itemsize, block_n, block_c)

    tgt2d = target.astype(jnp.int32).reshape(n, 1)

    if tile_c >= c:
        # Single-pass over the class axis; 1-D parallel row grid.
        nll = pl.pallas_call(
            functools.partial(_cross_entropy_kernel, ignore_index=ignore_index),
            out_shape=jax.ShapeDtypeStruct((n, 1), jnp.float32),
            grid=(pl.cdiv(n, tile_n),),
            in_specs=[
                pl.BlockSpec((tile_n, c), lambda i: (i, 0)),
                pl.BlockSpec((tile_n, 1), lambda i: (i, 0)),
            ],
            out_specs=pl.BlockSpec((tile_n, 1), lambda i: (i, 0)),
            compiler_params=pltpu.CompilerParams(
                dimension_semantics=("parallel",),
                vmem_limit_bytes=vmem_limit),
        )(output, tgt2d)
    else:
        # Class-tiled online-LSE path (large vocab): rows parallel, C arbitrary.
        nll = pl.pallas_call(
            functools.partial(_cross_entropy_ctiled_kernel,
                              ignore_index=ignore_index,
                              c_total=c, tile_c=tile_c),
            out_shape=jax.ShapeDtypeStruct((n, 1), jnp.float32),
            grid=(pl.cdiv(n, tile_n), pl.cdiv(c, tile_c)),
            in_specs=[
                pl.BlockSpec((tile_n, tile_c), lambda i, k: (i, k)),
                pl.BlockSpec((tile_n, 1), lambda i, k: (i, 0)),
            ],
            out_specs=pl.BlockSpec((tile_n, 1), lambda i, k: (i, 0)),
            scratch_shapes=[pltpu.VMEM((tile_n, 1), jnp.float32),
                            pltpu.VMEM((tile_n, 1), jnp.float32),
                            pltpu.VMEM((tile_n, 1), jnp.float32)],
            compiler_params=pltpu.CompilerParams(
                dimension_semantics=("parallel", "arbitrary"),
                vmem_limit_bytes=vmem_limit),
        )(output, tgt2d)

    nll = nll[:, 0]
    valid = jnp.sum((target.astype(jnp.int32) != ignore_index)
                    .astype(jnp.float32))
    return jnp.sum(nll) / valid


# ---------------------------------------------------------------------------
# Reference + tests
# ---------------------------------------------------------------------------
def _reference(logits, target, ignore_index=IGNORE_INDEX):
    lp = jax.nn.log_softmax(logits.astype(jnp.float32), axis=-1)
    t = jnp.clip(target, 0, logits.shape[-1] - 1)
    nll = -jnp.take_along_axis(lp, t[:, None], axis=-1)[:, 0]
    valid = target != ignore_index
    return jnp.sum(jnp.where(valid, nll, 0.0)) / jnp.sum(valid.astype(jnp.float32))


if __name__ == "__main__":
    key = jax.random.PRNGKey(0)
    k1, k2, k3, k4, k5, k6, k7, k8 = jax.random.split(key, 8)

    # Case 1: small f32 case (batch=8, classes=32), single block.
    N, C = 8, 32
    logits = jax.random.normal(k1, (N, C), dtype=jnp.float32)
    target = jax.random.randint(k2, (N,), 0, C, dtype=jnp.int32)
    loss = cross_entropy(logits, target)
    jax.block_until_ready(loss)
    ref = _reference(logits, target)
    assert jnp.allclose(loss, ref, atol=1e-5, rtol=1e-5), (loss, ref)

    # Case 2: bf16 logits, ragged batch (no logits padding anywhere).
    N2, C2 = 13, 160
    logits2 = jax.random.normal(k3, (N2, C2), dtype=jnp.float32).astype(jnp.bfloat16)
    target2 = jax.random.randint(k4, (N2,), 0, C2, dtype=jnp.int32)
    loss2 = cross_entropy(logits2, target2)
    jax.block_until_ready(loss2)
    ref2 = _reference(logits2, target2)
    assert jnp.allclose(loss2, ref2, atol=1e-5, rtol=1e-5), (loss2, ref2)

    # Case 3: forced small row tile -> partial last row block, plus an
    # ignore_index row (exercises the no-pad ragged path + masking).
    N3, C3 = 40, 64
    logits3 = jax.random.normal(k5, (N3, C3), dtype=jnp.float32)
    target3 = jax.random.randint(k6, (N3,), 0, C3, dtype=jnp.int32)
    target3 = target3.at[0].set(IGNORE_INDEX)
    loss3 = cross_entropy(logits3, target3, block_n=16)
    jax.block_until_ready(loss3)
    ref3 = _reference(logits3, target3)
    assert jnp.allclose(loss3, ref3, atol=1e-5, rtol=1e-5), (loss3, ref3)

    # Case 4: forced class tiling (online-LSE path) with a ragged C block.
    N4, C4 = 24, 200
    logits4 = jax.random.normal(k7, (N4, C4), dtype=jnp.float32)
    target4 = jax.random.randint(k8, (N4,), 0, C4, dtype=jnp.int32)
    target4 = target4.at[3].set(IGNORE_INDEX)
    loss4 = cross_entropy(logits4, target4, block_c=128)
    jax.block_until_ready(loss4)
    ref4 = _reference(logits4, target4)
    assert jnp.allclose(loss4, ref4, atol=2e-5, rtol=2e-5), (loss4, ref4)

    print("KERNEL_OK")
</pallas_src>

<mosaic_0001>
module attributes {stable_mosaic.version = 11 : i64} {
  func.func @_cross_entropy_kernel(%arg0: i32, %arg1: memref<8x32xf32, #tpu.memory_space<vmem>>, %arg2: memref<8x1xi32, #tpu.memory_space<vmem>>, %arg3: memref<8x1xf32, #tpu.memory_space<vmem>>) attributes {dimension_semantics = [#tpu.dimension_semantics<parallel>], iteration_bounds = array<i64: 1>, scalar_prefetch = 0 : i64, scratch_operands = 0 : i64, tpu.core_type = #tpu.core_type<tc>, window_params = [{transform_indices = @transform_0, window_bounds = array<i64: 8, 32>}, {transform_indices = @transform_1, window_bounds = array<i64: 8, 1>}, {transform_indices = @transform_2, window_bounds = array<i64: 8, 1>}]} {
    %c0 = arith.constant 0 : index
    %c0_0 = arith.constant 0 : index
    %0 = vector.load %arg1[%c0, %c0_0] : memref<8x32xf32, #tpu.memory_space<vmem>>, vector<8x32xf32>
    %c0_1 = arith.constant 0 : index
    %c0_2 = arith.constant 0 : index
    %1 = vector.load %arg2[%c0_1, %c0_2] : memref<8x1xi32, #tpu.memory_space<vmem>>, vector<8x1xi32>
    %cst = arith.constant dense<0xFF800000> : vector<8xf32>
    %2 = vector.multi_reduction <maximumf>, %0, %cst [1] : vector<8x32xf32> to vector<8xf32>
    %3 = vector.shape_cast %2 : vector<8xf32> to vector<8x1xf32>
    %4 = vector.broadcast %3 : vector<8x1xf32> to vector<8x32xf32>
    %5 = arith.subf %0, %4 : vector<8x32xf32>
    %6 = math.exp %5 : vector<8x32xf32>
    %cst_3 = arith.constant dense<0.000000e+00> : vector<8xf32>
    %7 = vector.multi_reduction <add>, %6, %cst_3 [1] : vector<8x32xf32> to vector<8xf32>
    %8 = vector.shape_cast %7 : vector<8xf32> to vector<8x1xf32>
    %9 = math.log %8 : vector<8x1xf32>
    %10 = arith.addf %3, %9 : vector<8x1xf32>
    %11 = tpu.iota {dimensions = array<i32: 1>} : vector<1x32xi32>
    %12 = vector.broadcast %11 : vector<1x32xi32> to vector<8x32xi32>
    %13 = vector.broadcast %1 : vector<8x1xi32> to vector<8x32xi32>
    %14 = arith.cmpi eq, %12, %13 : vector<8x32xi32>
    %cst_4 = arith.constant 0.000000e+00 : f32
    %15 = vector.broadcast %cst_4 : f32 to vector<8x32xf32>
    %16 = arith.select %14, %0, %15 : vector<8x32xi1>, vector<8x32xf32>
    %cst_5 = arith.constant dense<0.000000e+00> : vector<8xf32>
    %17 = vector.multi_reduction <add>, %16, %cst_5 [1] : vector<8x32xf32> to vector<8xf32>
    %18 = vector.shape_cast %17 : vector<8xf32> to vector<8x1xf32>
    %19 = arith.subf %10, %18 : vector<8x1xf32>
    %c-100_i32 = arith.constant -100 : i32
    %20 = vector.broadcast %c-100_i32 : i32 to vector<8x1xi32>
    %21 = arith.cmpi ne, %1, %20 : vector<8x1xi32>
    %cst_6 = arith.constant 0.000000e+00 : f32
    %22 = vector.broadcast %cst_6 : f32 to vector<8x1xf32>
    %23 = arith.select %21, %19, %22 : vector<8x1xi1>, vector<8x1xf32>
    %c0_7 = arith.constant 0 : index
    %c0_8 = arith.constant 0 : index
    %24 = vector.load %arg3[%c0_7, %c0_8] : memref<8x1xf32, #tpu.memory_space<vmem>>, vector<8x1xf32>
    tpu.vector_store %arg3[%c0_7, %c0_8], %23 {strides = array<i32>} : memref<8x1xf32, #tpu.memory_space<vmem>>, vector<8x1xf32>,
    return
  }
  func.func @transform_0(%arg0: i32) -> (i32, i32) {
    %c0_i32 = arith.constant 0 : i32
    %c0_i32_0 = arith.constant 0 : i32
    return %arg0, %c0_i32 : i32, i32
  }
  func.func @transform_1(%arg0: i32) -> (i32, i32) {
    %c0_i32 = arith.constant 0 : i32
    %c0_i32_0 = arith.constant 0 : i32
    return %arg0, %c0_i32 : i32, i32
  }
  func.func @transform_2(%arg0: i32) -> (i32, i32) {
    %c0_i32 = arith.constant 0 : i32
    %c0_i32_0 = arith.constant 0 : i32
    return %arg0, %c0_i32 : i32, i32
  }
}

</mosaic_0001>

<llo_original>
// kernel: tpu_custom_call.1
$region0: #{tpu_custom_call.1}
  #allocation0 [shape = 'u32[]', space=smem, size = 0x4, offset = 0x4, fixed_abs, tag = 'smem constant byte address 0x4 - core index']
  #allocation1 [shape = 'u32[144,128]{1,0:T(1,128)}', space=vmem, size = 0x12000, scoped, tag = 'internal scratch']
  %s0 = inlined_call_operand.vmem [shape: f32[8,32], index: 0, kind: input, shape index: {}]
  %s1 = inlined_call_operand.vmem [shape: s32[8,1], index: 1, kind: input, shape index: {}]
  %s2 = inlined_call_operand.vmem [shape: f32[8,1], index: 2, kind: output, shape index: {}]
  %s3 = sld [smem:[#allocation0]]
  $region18: #{tpu_custom_call.1} parent=0
    _
  %s5 = ssub.s32 1, %s3
  %s6 = scalar_select 0, %s5, %s3
  // Predicated region
  $region2: #{tpu_custom_call.1} parent=0 // pred_check
    _
  $region3: #{tpu_custom_call.1} parent=0 // pred_check_branch
    %8 = sbr.rel (0) target = $region5
  $region4: #{tpu_custom_call.1} parent=0 // pred_region
    _
  $region5: #{tpu_custom_call.1} parent=0 // pred_fallthru
    _
  // Predicated region
  $region6: #{tpu_custom_call.1} parent=0 // pred_check
    _
  $region7: #{tpu_custom_call.1} parent=0 // pred_check_branch
    %10 = sbr.rel (0) target = $region9
  $region8: #{tpu_custom_call.1} parent=0 // pred_region
    _
  $region9: #{tpu_custom_call.1} parent=0 // pred_fallthru
    _
  %v11 = vld [vmem:[%s0] sm:$0xff]
  %v12 = vld [vmem:[%s1] sm:$0xff]
  %vm13 = vcmask 261120
  %v14 = vsel %vm13, %v11, -inf
  %15 = vmax.xlane.f32.xlu0 %v14
  %v16 = vpop.xlane.xlu0 %15
  %v17 = vsub.f32 %v11, %v16
  %v18 = vmul.f32 %v17, 1.442695
  %v19 = vpow.pop %v18
  %v20 = vsel %vm13, %v19, 0.0
  %21 = vadd.xlane.f32.xlu0 %v20
  %v22 = vpop.xlane.xlu0 %21
  %v23 = vlog2.pop %v22
  %v24 = vmul.f32 %v23, 0.6931472
  %v25 = vadd.f32 %v16, %v24
  %v26 = vlaneseq
  %v27 = vand.u32 %v26, 127
  %28 = vset.pattern.permute.xlu0 0
  %29 = vperm.xlu0 %28, %v12
  %v30 = vpop.permute.xlu0 %29
  %vm31 = vcmp.eq.s32.totalorder %v27, %v30
  %v32 = vsel %vm31, %v11, 0.0
  %v33 = vsel %vm13, %v32, 0.0
  %34 = vadd.xlane.f32.xlu0 %v33
  %v35 = vpop.xlane.xlu0 %34
  %v36 = vsub.f32 %v25, %v35
  %vm37 = vcmp.ne.s32.totalorder %v12, 4294967196
  %v38 = vsel %vm37, %v36, 0.0
  %vm39 = vcmask 7168
  %40 = vst.msk [vmem:[%s2] sm:$0xff] %vm39, %v38
  // Predicated region
  $region10: #{tpu_custom_call.1} parent=0 // pred_check
    _
  $region11: #{tpu_custom_call.1} parent=0 // pred_check_branch
    %42 = sbr.rel (0) target = $region13
  $region12: #{tpu_custom_call.1} parent=0 // pred_region
    _
  $region13: #{tpu_custom_call.1} parent=0 // pred_fallthru
    _
  // Predicated region
  $region14: #{tpu_custom_call.1} parent=0 // pred_check
    _
  $region15: #{tpu_custom_call.1} parent=0 // pred_check_branch
    %44 = sbr.rel (0) target = $region17
  $region16: #{tpu_custom_call.1} parent=0 // pred_region
    _
  $region17: #{tpu_custom_call.1} parent=0 // pred_fallthru
    _

</llo_original>
